<compile_context>
chip_gen: v5e
topology: v5e:2x2
jax: 0.10.0
libtpu: 0.0.40
codegen_flags: <defaults>
</compile_context>

<pallas_src>
import functools

import jax
import jax.numpy as jnp
from jax.experimental import pallas as pl
from jax.experimental.pallas import tpu as pltpu

_LANES = 128
_SUBLANES = 8


def _round_up(x, m):
    return ((x + m - 1) // m) * m


def _mlp_kernel(x_ref, w1_ref, b1_ref, w2_ref, b2_ref, o_ref, acc_ref, *,
                activation, out_size, mxu_dtype):
    """One (batch-tile, hidden-tile) grid step of Linear -> activation -> Linear."""
    j = pl.program_id(1)

    @pl.when(j == 0)
    def _init():
        acc_ref[...] = jnp.zeros_like(acc_ref)

    x = x_ref[...]
    if mxu_dtype is not None:
        x = x.astype(mxu_dtype)          # weights are already pre-cast in the wrapper

    # hidden tile j: act(x @ W1[:, j] + b1[j])   (f32 MXU accumulation)
    h = jnp.dot(x, w1_ref[...], preferred_element_type=jnp.float32)
    h = h + b1_ref[...]                  # (1, TILE_H) broadcasts over the batch tile
    if activation == "relu":
        h = jnp.maximum(h, 0.0)
    elif activation == "tanh":
        h = jnp.tanh(h)
    elif activation == "logistic":
        h = jax.nn.sigmoid(h)
    # else: identity

    if mxu_dtype is not None:
        h = h.astype(mxu_dtype)

    # accumulate the second matmul over hidden tiles
    acc_ref[...] += jnp.dot(h, w2_ref[...], preferred_element_type=jnp.float32)

    @pl.when(j == pl.num_programs(1) - 1)
    def _finalize():
        out = acc_ref[...] + b2_ref[...]
        # acc is lane-padded to a multiple of 128 for the MXU; only the real
        # out_size columns are written back to HBM (cheap masked store).
        o_ref[...] = out[:, :out_size].astype(o_ref.dtype)


def _vmem_limit_bytes_default():
    """~3/4 of physical VMEM (≈48 MiB on v7x, ≈96 MiB on v5e/v6e)."""
    try:
        cap = getattr(pltpu.get_tpu_info(), "vmem_capacity_bytes", None)
        if cap:
            return int(min(max(int(cap) * 3 // 4, 32 * 1024 * 1024),
                           112 * 1024 * 1024))
    except Exception:
        pass
    return 48 * 1024 * 1024


def pallas_mlp(x, w1, b1, w2, b2, activation="relu", *, tile_b=512,
               mxu_dtype=None, vmem_limit_bytes=None):
    """Forward pass of PyTorchMLP.

    x : (B, input_size)  float32
    w1: (input_size, hidden)   (transposed vs. torch's (hidden, input_size))
    b1: (hidden,)
    w2: (hidden, output_size)
    b2: (output_size,)
    returns (B, output_size) float32
    """
    B, input_size = x.shape
    hidden = w1.shape[1]
    out_size = w2.shape[1]

    if vmem_limit_bytes is None:
        vmem_limit_bytes = _vmem_limit_bytes_default()

    # ---- batch tiling: pad only to 8 sublanes; >=2 tiles for mid-size batches ---
    B_eff = _round_up(B, _SUBLANES)
    if B >= 2 * tile_b:
        TILE_B = tile_b
    elif B_eff > 2 * _SUBLANES:
        # two tiles so the "parallel" batch axis can shard across v7x's two TCs
        TILE_B = _round_up(pl.cdiv(B_eff, 2), _SUBLANES)
    else:
        TILE_B = B_eff
    if B_eff != B:
        x = jnp.pad(x, ((0, B_eff - B), (0, 0)))    # tiny pad (< 8 rows)
    num_b_tiles = pl.cdiv(B_eff, TILE_B)
    # NOTE: if TILE_B doesn't divide B_eff, the tail tile reads unspecified rows and
    # its out-of-range output rows are dropped on write; safe because every output
    # row depends only on its own input row.

    # ---- lane-pad output cols for the 2nd matmul; HBM output stays unpadded -----
    out_cols = _round_up(out_size, _LANES)
    if out_cols != out_size:
        w2 = jnp.pad(w2, ((0, 0), (0, out_cols - out_size)))
        b2 = jnp.pad(b2, (0, out_cols - out_size))

    # ---- hidden tiling: weights stay VMEM-resident when they fit, else tile -----
    w_itemsize = jnp.dtype(mxu_dtype).itemsize if mxu_dtype is not None else 4
    weight_budget = vmem_limit_bytes // 2
    resident_bytes = w_itemsize * (input_size * hidden + hidden * out_cols)
    if resident_bytes <= weight_budget:
        TILE_H = hidden
        hidden_pad = hidden
    else:
        # TODO(synk): also tile input_size (K of the first matmul) for extremely
        # wide inputs where input_size * 128 columns alone exceeds the budget.
        per_col = 2 * w_itemsize * (input_size + out_cols)   # double-buffered blocks
        TILE_H = max(_LANES, min(1024, (weight_budget // per_col) // _LANES * _LANES))
        hidden_pad = _round_up(hidden, TILE_H)
        if hidden_pad != hidden:
            # zero-padded hidden: W2's zero rows guarantee padded units contribute 0
            # regardless of the activation's value at 0.
            w1 = jnp.pad(w1, ((0, 0), (0, hidden_pad - hidden)))
            b1 = jnp.pad(b1, (0, hidden_pad - hidden))
            w2 = jnp.pad(w2, ((0, hidden_pad - hidden), (0, 0)))
    num_h_tiles = hidden_pad // TILE_H
    weights_resident = num_h_tiles == 1

    # pre-cast weights once in the wrapper (halves weight HBM/VMEM bytes on the
    # bf16 path and avoids per-grid-step re-casting inside the kernel).
    if mxu_dtype is not None:
        w1 = w1.astype(mxu_dtype)
        w2 = w2.astype(mxu_dtype)

    b1_2d = b1.reshape(1, hidden_pad)
    b2_2d = b2.reshape(1, out_cols)

    kernel = functools.partial(_mlp_kernel, activation=activation,
                               out_size=out_size, mxu_dtype=mxu_dtype)

    flops = 2 * B_eff * (input_size * hidden_pad + hidden_pad * out_cols)
    transcendentals = B_eff * hidden_pad if activation in ("tanh", "logistic") else 0
    weight_fetches = 1 if weights_resident else num_b_tiles
    bytes_accessed = (
        4 * B_eff * input_size
        + w_itemsize * weight_fetches * (input_size * hidden_pad + hidden_pad * out_cols)
        + 4 * (hidden_pad + out_cols)
        + 4 * B_eff * out_size
    )

    def run(use_single_buffer):
        def wspec(shape, index_map, constant_index):
            if use_single_buffer and constant_index:
                # constant-index blocks don't need double buffering
                return pl.BlockSpec(shape, index_map, pipeline_mode=pl.Buffered(1))
            return pl.BlockSpec(shape, index_map)

        in_specs = [
            pl.BlockSpec((TILE_B, input_size), lambda i, j: (i, 0)),
            wspec((input_size, TILE_H), lambda i, j: (0, j), weights_resident),
            wspec((1, TILE_H), lambda i, j: (0, j), weights_resident),
            wspec((TILE_H, out_cols), lambda i, j: (j, 0), weights_resident),
            wspec((1, out_cols), lambda i, j: (0, 0), True),
        ]
        out_specs = pl.BlockSpec((TILE_B, out_size), lambda i, j: (i, 0))

        return pl.pallas_call(
            kernel,
            out_shape=jax.ShapeDtypeStruct((B_eff, out_size), jnp.float32),
            grid=(num_b_tiles, num_h_tiles),
            in_specs=in_specs,
            out_specs=out_specs,
            scratch_shapes=[pltpu.VMEM((TILE_B, out_cols), jnp.float32)],
            compiler_params=pltpu.CompilerParams(
                dimension_semantics=("parallel", "arbitrary"),
                vmem_limit_bytes=int(vmem_limit_bytes),
            ),
            cost_estimate=pl.CostEstimate(
                flops=flops,
                transcendentals=transcendentals,
                bytes_accessed=bytes_accessed,
            ),
        )(x, w1, b1_2d, w2, b2_2d)

    try:
        out = run(True)
    except Exception:
        # pipeline_mode=pl.Buffered(1) not supported in this JAX build -> default
        # double-buffered specs (correctness identical, slightly higher VMEM use).
        out = run(False)

    if B_eff != B:
        out = out[:B]
    return out


def init_mlp_params(key, input_size, hidden_layer_sizes, output_size=1):
    """Deterministic init matching torch.nn.Linear's U(-1/sqrt(fan_in), 1/sqrt(fan_in))."""
    k1, k2, k3, k4 = jax.random.split(key, 4)
    bound1 = 1.0 / jnp.sqrt(input_size)
    bound2 = 1.0 / jnp.sqrt(hidden_layer_sizes)
    # Stored already transposed to (in, out) for the kernel.
    w1 = jax.random.uniform(k1, (input_size, hidden_layer_sizes),
                            minval=-bound1, maxval=bound1, dtype=jnp.float32)
    b1 = jax.random.uniform(k2, (hidden_layer_sizes,),
                            minval=-bound1, maxval=bound1, dtype=jnp.float32)
    w2 = jax.random.uniform(k3, (hidden_layer_sizes, output_size),
                            minval=-bound2, maxval=bound2, dtype=jnp.float32)
    b2 = jax.random.uniform(k4, (output_size,),
                            minval=-bound2, maxval=bound2, dtype=jnp.float32)
    return w1, b1, w2, b2


def reference_mlp(x, w1, b1, w2, b2, activation="relu"):
    h = x @ w1 + b1
    if activation == "relu":
        h = jnp.maximum(h, 0.0)
    elif activation == "tanh":
        h = jnp.tanh(h)
    elif activation == "logistic":
        h = jax.nn.sigmoid(h)
    return h @ w2 + b2


if __name__ == "__main__":
    key = jax.random.PRNGKey(0)
    kx, kp = jax.random.split(key)

    batch = 8
    input_size = 16
    hidden_layer_sizes = 32
    output_size = 1
    activation = "relu"

    x = jax.random.normal(kx, (batch, input_size), dtype=jnp.float32)
    w1, b1, w2, b2 = init_mlp_params(kp, input_size, hidden_layer_sizes, output_size)

    # Default f32 MXU inputs keep the tight tolerance; pass mxu_dtype=jnp.bfloat16
    # for compute-bound shapes on v6e/v7x (loosen atol accordingly).
    out = pallas_mlp(x, w1, b1, w2, b2, activation=activation)
    out = jax.block_until_ready(out)

    ref = reference_mlp(x, w1, b1, w2, b2, activation=activation)
    assert out.shape == (batch, output_size)
    assert jnp.allclose(out, ref, atol=1e-5, rtol=1e-5), "mismatch vs reference"

    print("KERNEL_OK")
</pallas_src>

<mosaic_0001>
module attributes {stable_mosaic.version = 11 : i64} {
  func.func @_mlp_kernel(%arg0: i32, %arg1: i32, %arg2: memref<8x16xf32, #tpu.memory_space<vmem>>, %arg3: memref<16x32xf32, #tpu.memory_space<vmem>>, %arg4: memref<1x32xf32, #tpu.memory_space<vmem>>, %arg5: memref<32x128xf32, #tpu.memory_space<vmem>>, %arg6: memref<1x128xf32, #tpu.memory_space<vmem>>, %arg7: memref<8x1xf32, #tpu.memory_space<vmem>>, %arg8: memref<8x128xf32, #tpu.memory_space<vmem>>) attributes {dimension_semantics = [#tpu.dimension_semantics<parallel>, #tpu.dimension_semantics<arbitrary>], iteration_bounds = array<i64: 1, 1>, scalar_prefetch = 0 : i64, scratch_operands = 1 : i64, tpu.core_type = #tpu.core_type<tc>, window_params = [{transform_indices = @transform_0, window_bounds = array<i64: 8, 16>}, {pipeline_mode = #tpu.pipeline_mode<synchronous>, transform_indices = @transform_1, window_bounds = array<i64: 16, 32>}, {pipeline_mode = #tpu.pipeline_mode<synchronous>, transform_indices = @transform_2, window_bounds = array<i64: 1, 32>}, {pipeline_mode = #tpu.pipeline_mode<synchronous>, transform_indices = @transform_3, window_bounds = array<i64: 32, 128>}, {pipeline_mode = #tpu.pipeline_mode<synchronous>, transform_indices = @transform_4, window_bounds = array<i64: 1, 128>}, {transform_indices = @transform_5, window_bounds = array<i64: 8, 1>}]} {
    %c0_i32 = arith.constant 0 : i32
    %0 = arith.cmpi eq, %arg1, %c0_i32 : i32
    %1 = arith.extui %0 : i1 to i32
    %c0_i32_0 = arith.constant 0 : i32
    %2 = arith.cmpi ne, %1, %c0_i32_0 : i32
    scf.if %2 {
      %cst_16 = arith.constant 0.000000e+00 : f32
      %19 = vector.broadcast %cst_16 : f32 to vector<8x128xf32>
      %c0_17 = arith.constant 0 : index
      %c0_18 = arith.constant 0 : index
      %20 = vector.load %arg8[%c0_17, %c0_18] : memref<8x128xf32, #tpu.memory_space<vmem>>, vector<8x128xf32>
      tpu.vector_store %arg8[%c0_17, %c0_18], %19 {strides = array<i32>} : memref<8x128xf32, #tpu.memory_space<vmem>>, vector<8x128xf32>,
    } else {
    }
    %c0 = arith.constant 0 : index
    %c0_1 = arith.constant 0 : index
    %3 = vector.load %arg2[%c0, %c0_1] : memref<8x16xf32, #tpu.memory_space<vmem>>, vector<8x16xf32>
    %c0_2 = arith.constant 0 : index
    %c0_3 = arith.constant 0 : index
    %4 = vector.load %arg3[%c0_2, %c0_3] : memref<16x32xf32, #tpu.memory_space<vmem>>, vector<16x32xf32>
    %cst = arith.constant dense<0.000000e+00> : vector<8x32xf32>
    %5 = tpu.matmul %3, %4, %cst {dimension_numbers = #tpu.dot_dimension_numbers<[1], [0], [0], [1], [0, 0, 1, 1], [], []>} : vector<8x16xf32>, vector<16x32xf32>, vector<8x32xf32> -> vector<8x32xf32>
    %c0_4 = arith.constant 0 : index
    %c0_5 = arith.constant 0 : index
    %6 = vector.load %arg4[%c0_4, %c0_5] : memref<1x32xf32, #tpu.memory_space<vmem>>, vector<1x32xf32>
    %7 = vector.broadcast %6 : vector<1x32xf32> to vector<8x32xf32>
    %8 = arith.addf %5, %7 : vector<8x32xf32>
    %cst_6 = arith.constant 0.000000e+00 : f32
    %9 = vector.broadcast %cst_6 : f32 to vector<8x32xf32>
    %10 = arith.maximumf %8, %9 : vector<8x32xf32>
    %c0_7 = arith.constant 0 : index
    %c0_8 = arith.constant 0 : index
    %11 = vector.load %arg8[%c0_7, %c0_8] : memref<8x128xf32, #tpu.memory_space<vmem>>, vector<8x128xf32>
    %c0_9 = arith.constant 0 : index
    %c0_10 = arith.constant 0 : index
    %12 = vector.load %arg5[%c0_9, %c0_10] : memref<32x128xf32, #tpu.memory_space<vmem>>, vector<32x128xf32>
    %cst_11 = arith.constant dense<0.000000e+00> : vector<8x128xf32>
    %13 = tpu.matmul %10, %12, %cst_11 {dimension_numbers = #tpu.dot_dimension_numbers<[1], [0], [0], [1], [0, 0, 1, 1], [], []>} : vector<8x32xf32>, vector<32x128xf32>, vector<8x128xf32> -> vector<8x128xf32>
    %14 = arith.addf %11, %13 : vector<8x128xf32>
    %c0_12 = arith.constant 0 : index
    %c0_13 = arith.constant 0 : index
    %15 = vector.load %arg8[%c0_12, %c0_13] : memref<8x128xf32, #tpu.memory_space<vmem>>, vector<8x128xf32>
    tpu.vector_store %arg8[%c0_12, %c0_13], %14 {strides = array<i32>} : memref<8x128xf32, #tpu.memory_space<vmem>>, vector<8x128xf32>,
    %c0_i32_14 = arith.constant 0 : i32
    %16 = arith.cmpi eq, %arg1, %c0_i32_14 : i32
    %17 = arith.extui %16 : i1 to i32
    %c0_i32_15 = arith.constant 0 : i32
    %18 = arith.cmpi ne, %17, %c0_i32_15 : i32
    scf.if %18 {
      %c0_16 = arith.constant 0 : index
      %c0_17 = arith.constant 0 : index
      %19 = vector.load %arg8[%c0_16, %c0_17] : memref<8x128xf32, #tpu.memory_space<vmem>>, vector<8x128xf32>
      %c0_18 = arith.constant 0 : index
      %c0_19 = arith.constant 0 : index
      %20 = vector.load %arg6[%c0_18, %c0_19] : memref<1x128xf32, #tpu.memory_space<vmem>>, vector<1x128xf32>
      %21 = vector.broadcast %20 : vector<1x128xf32> to vector<8x128xf32>
      %22 = arith.addf %19, %21 : vector<8x128xf32>
      %23 = vector.extract_strided_slice %22 {offsets = [0, 0], sizes = [8, 1], strides = [1, 1]} : vector<8x128xf32> to vector<8x1xf32>
      %c0_20 = arith.constant 0 : index
      %c0_21 = arith.constant 0 : index
      %24 = vector.load %arg7[%c0_20, %c0_21] : memref<8x1xf32, #tpu.memory_space<vmem>>, vector<8x1xf32>
      tpu.vector_store %arg7[%c0_20, %c0_21], %23 {strides = array<i32>} : memref<8x1xf32, #tpu.memory_space<vmem>>, vector<8x1xf32>,
    } else {
    }
    return
  }
  func.func @transform_0(%arg0: i32, %arg1: i32) -> (i32, i32) {
    %c0_i32 = arith.constant 0 : i32
    %c0_i32_0 = arith.constant 0 : i32
    return %arg0, %c0_i32 : i32, i32
  }
  func.func @transform_1(%arg0: i32, %arg1: i32) -> (i32, i32) {
    %c0_i32 = arith.constant 0 : i32
    %c0_i32_0 = arith.constant 0 : i32
    return %c0_i32, %arg1 : i32, i32
  }
  func.func @transform_2(%arg0: i32, %arg1: i32) -> (i32, i32) {
    %c0_i32 = arith.constant 0 : i32
    %c0_i32_0 = arith.constant 0 : i32
    return %c0_i32, %arg1 : i32, i32
  }
  func.func @transform_3(%arg0: i32, %arg1: i32) -> (i32, i32) {
    %c0_i32 = arith.constant 0 : i32
    %c0_i32_0 = arith.constant 0 : i32
    return %arg1, %c0_i32 : i32, i32
  }
  func.func @transform_4(%arg0: i32, %arg1: i32) -> (i32, i32) {
    %c0_i32 = arith.constant 0 : i32
    %c0_i32_0 = arith.constant 0 : i32
    %c0_i32_1 = arith.constant 0 : i32
    return %c0_i32, %c0_i32_0 : i32, i32
  }
  func.func @transform_5(%arg0: i32, %arg1: i32) -> (i32, i32) {
    %c0_i32 = arith.constant 0 : i32
    %c0_i32_0 = arith.constant 0 : i32
    return %arg0, %c0_i32 : i32, i32
  }
}

module attributes {stable_mosaic.version = 11 : i64} {
  func.func @_mlp_kernel(%arg0: i32, %arg1: i32, %arg2: memref<8x16xf32, #tpu.memory_space<vmem>>, %arg3: memref<16x32xf32, #tpu.memory_space<vmem>>, %arg4: memref<1x32xf32, #tpu.memory_space<vmem>>, %arg5: memref<32x128xf32, #tpu.memory_space<vmem>>, %arg6: memref<1x128xf32, #tpu.memory_space<vmem>>, %arg7: memref<8x1xf32, #tpu.memory_space<vmem>>, %arg8: memref<8x128xf32, #tpu.memory_space<vmem>>) attributes {dimension_semantics = [#tpu.dimension_semantics<parallel>, #tpu.dimension_semantics<arbitrary>], iteration_bounds = array<i64: 1, 1>, scalar_prefetch = 0 : i64, scratch_operands = 1 : i64, tpu.core_type = #tpu.core_type<tc>, window_params = [{transform_indices = @transform_0, window_bounds = array<i64: 8, 16>}, {transform_indices = @transform_1, window_bounds = array<i64: 16, 32>}, {transform_indices = @transform_2, window_bounds = array<i64: 1, 32>}, {transform_indices = @transform_3, window_bounds = array<i64: 32, 128>}, {pipeline_mode = #tpu.pipeline_mode<synchronous>, transform_indices = @transform_4, window_bounds = array<i64: 1, 128>}, {transform_indices = @transform_5, window_bounds = array<i64: 8, 1>}]} {
    %c0_i32 = arith.constant 0 : i32
    %0 = arith.cmpi eq, %arg1, %c0_i32 : i32
    %1 = arith.extui %0 : i1 to i32
    %c0_i32_0 = arith.constant 0 : i32
    %2 = arith.cmpi ne, %1, %c0_i32_0 : i32
    scf.if %2 {
      %cst_16 = arith.constant 0.000000e+00 : f32
      %19 = vector.broadcast %cst_16 : f32 to vector<8x128xf32>
      %c0_17 = arith.constant 0 : index
      %c0_18 = arith.constant 0 : index
      %20 = vector.load %arg8[%c0_17, %c0_18] : memref<8x128xf32, #tpu.memory_space<vmem>>, vector<8x128xf32>
      tpu.vector_store %arg8[%c0_17, %c0_18], %19 {strides = array<i32>} : memref<8x128xf32, #tpu.memory_space<vmem>>, vector<8x128xf32>,
    } else {
    }
    %c0 = arith.constant 0 : index
    %c0_1 = arith.constant 0 : index
    %3 = vector.load %arg2[%c0, %c0_1] : memref<8x16xf32, #tpu.memory_space<vmem>>, vector<8x16xf32>
    %c0_2 = arith.constant 0 : index
    %c0_3 = arith.constant 0 : index
    %4 = vector.load %arg3[%c0_2, %c0_3] : memref<16x32xf32, #tpu.memory_space<vmem>>, vector<16x32xf32>
    %cst = arith.constant dense<0.000000e+00> : vector<8x32xf32>
    %5 = tpu.matmul %3, %4, %cst {dimension_numbers = #tpu.dot_dimension_numbers<[1], [0], [0], [1], [0, 0, 1, 1], [], []>} : vector<8x16xf32>, vector<16x32xf32>, vector<8x32xf32> -> vector<8x32xf32>
    %c0_4 = arith.constant 0 : index
    %c0_5 = arith.constant 0 : index
    %6 = vector.load %arg4[%c0_4, %c0_5] : memref<1x32xf32, #tpu.memory_space<vmem>>, vector<1x32xf32>
    %7 = vector.broadcast %6 : vector<1x32xf32> to vector<8x32xf32>
    %8 = arith.addf %5, %7 : vector<8x32xf32>
    %cst_6 = arith.constant 0.000000e+00 : f32
    %9 = vector.broadcast %cst_6 : f32 to vector<8x32xf32>
    %10 = arith.maximumf %8, %9 : vector<8x32xf32>
    %c0_7 = arith.constant 0 : index
    %c0_8 = arith.constant 0 : index
    %11 = vector.load %arg8[%c0_7, %c0_8] : memref<8x128xf32, #tpu.memory_space<vmem>>, vector<8x128xf32>
    %c0_9 = arith.constant 0 : index
    %c0_10 = arith.constant 0 : index
    %12 = vector.load %arg5[%c0_9, %c0_10] : memref<32x128xf32, #tpu.memory_space<vmem>>, vector<32x128xf32>
    %cst_11 = arith.constant dense<0.000000e+00> : vector<8x128xf32>
    %13 = tpu.matmul %10, %12, %cst_11 {dimension_numbers = #tpu.dot_dimension_numbers<[1], [0], [0], [1], [0, 0, 1, 1], [], []>} : vector<8x32xf32>, vector<32x128xf32>, vector<8x128xf32> -> vector<8x128xf32>
    %14 = arith.addf %11, %13 : vector<8x128xf32>
    %c0_12 = arith.constant 0 : index
    %c0_13 = arith.constant 0 : index
    %15 = vector.load %arg8[%c0_12, %c0_13] : memref<8x128xf32, #tpu.memory_space<vmem>>, vector<8x128xf32>
    tpu.vector_store %arg8[%c0_12, %c0_13], %14 {strides = array<i32>} : memref<8x128xf32, #tpu.memory_space<vmem>>, vector<8x128xf32>,
    %c0_i32_14 = arith.constant 0 : i32
    %16 = arith.cmpi eq, %arg1, %c0_i32_14 : i32
    %17 = arith.extui %16 : i1 to i32
    %c0_i32_15 = arith.constant 0 : i32
    %18 = arith.cmpi ne, %17, %c0_i32_15 : i32
    scf.if %18 {
      %c0_16 = arith.constant 0 : index
      %c0_17 = arith.constant 0 : index
      %19 = vector.load %arg8[%c0_16, %c0_17] : memref<8x128xf32, #tpu.memory_space<vmem>>, vector<8x128xf32>
      %c0_18 = arith.constant 0 : index
      %c0_19 = arith.constant 0 : index
      %20 = vector.load %arg6[%c0_18, %c0_19] : memref<1x128xf32, #tpu.memory_space<vmem>>, vector<1x128xf32>
      %21 = vector.broadcast %20 : vector<1x128xf32> to vector<8x128xf32>
      %22 = arith.addf %19, %21 : vector<8x128xf32>
      %23 = vector.extract_strided_slice %22 {offsets = [0, 0], sizes = [8, 1], strides = [1, 1]} : vector<8x128xf32> to vector<8x1xf32>
      %c0_20 = arith.constant 0 : index
      %c0_21 = arith.constant 0 : index
      %24 = vector.load %arg7[%c0_20, %c0_21] : memref<8x1xf32, #tpu.memory_space<vmem>>, vector<8x1xf32>
      tpu.vector_store %arg7[%c0_20, %c0_21], %23 {strides = array<i32>} : memref<8x1xf32, #tpu.memory_space<vmem>>, vector<8x1xf32>,
    } else {
    }
    return
  }
  func.func @transform_0(%arg0: i32, %arg1: i32) -> (i32, i32) {
    %c0_i32 = arith.constant 0 : i32
    %c0_i32_0 = arith.constant 0 : i32
    return %arg0, %c0_i32 : i32, i32
  }
  func.func @transform_1(%arg0: i32, %arg1: i32) -> (i32, i32) {
    %c0_i32 = arith.constant 0 : i32
    %c0_i32_0 = arith.constant 0 : i32
    return %c0_i32, %arg1 : i32, i32
  }
  func.func @transform_2(%arg0: i32, %arg1: i32) -> (i32, i32) {
    %c0_i32 = arith.constant 0 : i32
    %c0_i32_0 = arith.constant 0 : i32
    return %c0_i32, %arg1 : i32, i32
  }
  func.func @transform_3(%arg0: i32, %arg1: i32) -> (i32, i32) {
    %c0_i32 = arith.constant 0 : i32
    %c0_i32_0 = arith.constant 0 : i32
    return %arg1, %c0_i32 : i32, i32
  }
  func.func @transform_4(%arg0: i32, %arg1: i32) -> (i32, i32) {
    %c0_i32 = arith.constant 0 : i32
    %c0_i32_0 = arith.constant 0 : i32
    %c0_i32_1 = arith.constant 0 : i32
    return %c0_i32, %c0_i32_0 : i32, i32
  }
  func.func @transform_5(%arg0: i32, %arg1: i32) -> (i32, i32) {
    %c0_i32 = arith.constant 0 : i32
    %c0_i32_0 = arith.constant 0 : i32
    return %arg0, %c0_i32 : i32, i32
  }
}

</mosaic_0001>

<llo_original>
// kernel: tpu_custom_call.1
$region0: #{tpu_custom_call.1}
  #allocation0 [shape = 'u32[]', space=smem, size = 0x4, offset = 0x4, fixed_abs, tag = 'smem constant byte address 0x4 - core index']
  #allocation1 [shape = 'u32[72,128]{1,0:T(1,128)}', space=vmem, size = 0x9000, scoped, tag = 'internal scratch']
  #allocation2 [shape = 'f32[8,128]{1,0:T(8,128)}', space=vmem, size = 0x1000, scoped, tag = 'scratch operand']
  %s0 = inlined_call_operand.hbm [shape: f32[8,16], index: 0, kind: input, shape index: {}]
  %s1 = inlined_call_operand.hbm [shape: f32[16,32], index: 1, kind: input, shape index: {}]
  %s2 = inlined_call_operand.vmem [shape: f32[1,32], index: 2, kind: input, shape index: {}]
  %s3 = inlined_call_operand.hbm [shape: f32[32,128], index: 3, kind: input, shape index: {}]
  %s4 = inlined_call_operand.vmem [shape: f32[1,128], index: 4, kind: input, shape index: {}]
  %s5 = inlined_call_operand.vmem [shape: f32[8,1], index: 5, kind: output, shape index: {}]
  %s6 = sld [smem:[#allocation0]]
  $region50: #{tpu_custom_call.1} parent=0
    _
  %s8 = ssub.s32 1, %s6
  %s9 = scalar_select 0, %s8, %s6
  $region1: #{tpu_custom_call.1} parent=0
    #allocation3 [shape = 'u8[4096]{0}', space=vmem, size = 0x1000, scoped, tag = 'input window, operand 0, single buffered']
    #allocation4 [shape = 's32[1]{0}', space=sflag, size = 0x4, scoped, tag = 'scoped memory for tpu_custom_call.1']
    #allocation5 [shape = 'u8[8192]{0}', space=vmem, size = 0x2000, scoped, tag = 'input window, operand 1, single buffered']
    #allocation6 [shape = 's32[1]{0}', space=sflag, size = 0x4, scoped, tag = 'scoped memory for tpu_custom_call.1']
    #allocation7 [shape = 'u8[16384]{0}', space=vmem, size = 0x4000, scoped, tag = 'input window, operand 3, single buffered']
    %10 = vsyncpa [#allocation4], 0
    %11 = vsyncpa [#allocation6], 0
    // Predicated region
    $region2: #{tpu_custom_call.1} parent=1 // pred_check
      _
    $region3: #{tpu_custom_call.1} parent=1 // pred_check_branch
      %13 = sbr.rel (0) target = $region5
    $region4: #{tpu_custom_call.1} parent=1 // pred_region
      %15 = vsyncadd [#allocation4], 0
      %s17 = sshll.u32 %s0, 4
      %s18 = int_to_ptr.hbm [resolvable:$true] %s17
      %s19 = sshll.u32 [#allocation3], 4
      %s20 = int_to_ptr.vmem [resolvable:$true] %s19
      %22 = dma.hbm_to_vmem [thread:$0]  %s18, 128, %s20, [#allocation4]
    $region5: #{tpu_custom_call.1} parent=1 // pred_fallthru
      _
    // Predicated region
    $region6: #{tpu_custom_call.1} parent=1 // pred_check
      _
    $region7: #{tpu_custom_call.1} parent=1 // pred_check_branch
      %24 = sbr.rel (0) target = $region9
    $region8: #{tpu_custom_call.1} parent=1 // pred_region
      %26 = vsyncadd [#allocation6], 0
      %s27 = sshll.u32 %s1, 4
      %s28 = int_to_ptr.hbm [resolvable:$true] %s27
      %s29 = sshll.u32 [#allocation5], 4
      %s30 = int_to_ptr.vmem [resolvable:$true] %s29
      %35 = dma.hbm_to_vmem [thread:$0]  %s28, 256, %s30, [#allocation6], 128, 128, 8
    $region9: #{tpu_custom_call.1} parent=1 // pred_fallthru
      _
    // Predicated region
    $region10: #{tpu_custom_call.1} parent=1 // pred_check
      _
    $region11: #{tpu_custom_call.1} parent=1 // pred_check_branch
      %37 = sbr.rel (0) target = $region13
    $region12: #{tpu_custom_call.1} parent=1 // pred_region
      _
    $region13: #{tpu_custom_call.1} parent=1 // pred_fallthru
      _
    // Predicated region
    $region14: #{tpu_custom_call.1} parent=1 // pred_check
      _
    $region15: #{tpu_custom_call.1} parent=1 // pred_check_branch
      %39 = sbr.rel (0) target = $region17
    $region16: #{tpu_custom_call.1} parent=1 // pred_region
      %41 = vsyncadd [#allocation6], 0
      %s42 = sshll.u32 %s3, 4
      %s43 = int_to_ptr.hbm [resolvable:$true] %s42
      %s44 = sshll.u32 [#allocation7], 4
      %s45 = int_to_ptr.vmem [resolvable:$true] %s44
      %50 = dma.hbm_to_vmem [thread:$0]  %s43, 512, %s45, [#allocation6], 128, 128, 8
    $region17: #{tpu_custom_call.1} parent=1 // pred_fallthru
      _
    // Predicated region
    $region18: #{tpu_custom_call.1} parent=1 // pred_check
      _
    $region19: #{tpu_custom_call.1} parent=1 // pred_check_branch
      %52 = sbr.rel (0) target = $region21
    $region20: #{tpu_custom_call.1} parent=1 // pred_region
      _
    $region21: #{tpu_custom_call.1} parent=1 // pred_fallthru
      _
    // Predicated region
    $region22: #{tpu_custom_call.1} parent=1 // pred_check
      _
    $region23: #{tpu_custom_call.1} parent=1 // pred_check_branch
      %54 = sbr.rel (0) target = $region25
    $region24: #{tpu_custom_call.1} parent=1 // pred_region
      %56 = dma.done [#allocation4], 128
    $region25: #{tpu_custom_call.1} parent=1 // pred_fallthru
      _
    // Predicated region
    $region26: #{tpu_custom_call.1} parent=1 // pred_check
      _
    $region27: #{tpu_custom_call.1} parent=1 // pred_check_branch
      %58 = sbr.rel (0) target = $region29
    $region28: #{tpu_custom_call.1} parent=1 // pred_region
      %60 = dma.done [#allocation6], 256
    $region29: #{tpu_custom_call.1} parent=1 // pred_fallthru
      _
    // Predicated region
    $region30: #{tpu_custom_call.1} parent=1 // pred_check
      _
    $region31: #{tpu_custom_call.1} parent=1 // pred_check_branch
      %62 = sbr.rel (0) target = $region33
    $region32: #{tpu_custom_call.1} parent=1 // pred_region
      %64 = dma.done [#allocation6], 512
    $region33: #{tpu_custom_call.1} parent=1 // pred_fallthru
      _
    %p65 = scmp.eq.s32.totalorder 0, 0
    // Predicated region
    $region34: #{tpu_custom_call.1} parent=1 // pred_check
      %p66 = pneg %p65
    $region35: #{tpu_custom_call.1} parent=1 // pred_check_branch
      %68 = sbr.rel (%p66) target = $region37
    $region36: #{tpu_custom_call.1} parent=1 // pred_region
      %69 = vst [vmem:[#allocation2] sm:$0xff] 0.0
    $region37: #{tpu_custom_call.1} parent=1 // pred_fallthru
      _
    %v70 = vld [vmem:[#allocation3] sm:$0xff]
    %v71 = vld [vmem:[#allocation5] sm:$0xff]
    %v72 = vld [vmem:[#allocation5 + $0x8] sm:$0xff]
    %v73 = vld [vmem:[%s2] sm:$0x1]
    %v75 = vperm.slane %v73, 0
    %vm77 = vcmask 130048
    %v79 = vsel %vm77, %v70, 0
    %81 = vmatpush.msra.mxu0 0.0
    %82 = vmatpush.msra.mxu0 0.0
    %83 = vmatpush.msra.mxu0 0.0
    %84 = vmatpush.msra.mxu0 0.0
    %85 = vmatpush.msra.mxu0 0.0
    %86 = vmatpush.msra.mxu0 0.0
    %87 = vmatpush.msra.mxu0 0.0
    %88 = vmatpush.msra.mxu0 0.0
    %89 = vmatpush.msra.mxu0 0.0
    %90 = vmatpush.msra.mxu0 0.0
    %91 = vmatpush.msra.mxu0 0.0
    %92 = vmatpush.msra.mxu0 0.0
    %93 = vmatpush.msra.mxu0 0.0
    %94 = vmatpush.msra.mxu0 0.0
    %95 = vmatpush.msra.mxu0 %v72
    %96 = vmatpush.msra.mxu0 %v71
    %97 = vmatmul.f32.gmra.mxu0 %v79
    %v98 = vpop.f32.mrf.mxu0
    %v99 = vadd.f32 %v75, %v98
    %100 = vdwg.mxu0
    %v101 = vmax.f32 %v99, 0.0
    %v102 = vld [vmem:[#allocation2] sm:$0xff]
    %v103 = vld [vmem:[#allocation7] sm:$0xff]
    %v104 = vld [vmem:[#allocation7 + $0x8] sm:$0xff]
    %v105 = vld [vmem:[#allocation7 + $0x10] sm:$0xff]
    %v106 = vld [vmem:[#allocation7 + $0x18] sm:$0xff]
    %vm107 = vcmask 261120
    %v109 = vsel %vm107, %v101, 0
    %111 = vmatpush.msra.mxu0 0.0
    %112 = vmatpush.msra.mxu0 0.0
    %113 = vmatpush.msra.mxu0 0.0
    %114 = vmatpush.msra.mxu0 0.0
    %115 = vmatpush.msra.mxu0 0.0
    %116 = vmatpush.msra.mxu0 0.0
    %117 = vmatpush.msra.mxu0 0.0
    %118 = vmatpush.msra.mxu0 0.0
    %119 = vmatpush.msra.mxu0 0.0
    %120 = vmatpush.msra.mxu0 0.0
    %121 = vmatpush.msra.mxu0 0.0
    %122 = vmatpush.msra.mxu0 0.0
    %123 = vmatpush.msra.mxu0 %v106
    %124 = vmatpush.msra.mxu0 %v105
    %125 = vmatpush.msra.mxu0 %v104
    %126 = vmatpush.msra.mxu0 %v103
    %127 = vmatmul.f32.gmra.mxu0 %v109
    %v128 = vpop.f32.mrf.mxu0
    %v129 = vadd.f32 0.0, %v128
    %130 = vdwg.mxu0
    %v131 = vadd.f32 %v102, %v129
    %132 = vst [vmem:[#allocation2] sm:$0xff] %v131
    // Predicated region
    $region38: #{tpu_custom_call.1} parent=1 // pred_check
      %p133 = pneg %p65
    $region39: #{tpu_custom_call.1} parent=1 // pred_check_branch
      %135 = sbr.rel (%p133) target = $region41
    $region40: #{tpu_custom_call.1} parent=1 // pred_region
      %v136 = vld [vmem:[#allocation2] sm:$0xff]
      %v137 = vld [vmem:[%s4] sm:$0x1]
      %v139 = vperm.slane %v137, 0
      %v141 = vadd.f32 %v136, %v139
      %vm142 = vcmask 7168
      %143 = vst.msk [vmem:[%s5] sm:$0xff] %vm142, %v141
    $region41: #{tpu_custom_call.1} parent=1 // pred_fallthru
      _
    // Predicated region
    $region42: #{tpu_custom_call.1} parent=1 // pred_check
      _
    $region43: #{tpu_custom_call.1} parent=1 // pred_check_branch
      %145 = sbr.rel (0) target = $region45
    $region44: #{tpu_custom_call.1} parent=1 // pred_region
      _
    $region45: #{tpu_custom_call.1} parent=1 // pred_fallthru
      _
    // Predicated region
    $region46: #{tpu_custom_call.1} parent=1 // pred_check
      _
    $region47: #{tpu_custom_call.1} parent=1 // pred_check_branch
      %147 = sbr.rel (0) target = $region49
    $region48: #{tpu_custom_call.1} parent=1 // pred_region
      _
    $region49: #{tpu_custom_call.1} parent=1 // pred_fallthru
      _
    %148 = vsyncpa [#allocation4], 1
    %149 = vsyncpa [#allocation6], 1

// kernel: tpu_custom_call.1
$region0: #{tpu_custom_call.1}
  #allocation0 [shape = 'u32[]', space=smem, size = 0x4, offset = 0x4, fixed_abs, tag = 'smem constant byte address 0x4 - core index']
  #allocation1 [shape = 'u32[72,128]{1,0:T(1,128)}', space=vmem, size = 0x9000, scoped, tag = 'internal scratch']
  #allocation2 [shape = 'f32[8,128]{1,0:T(8,128)}', space=vmem, size = 0x1000, scoped, tag = 'scratch operand']
  %s0 = inlined_call_operand.hbm [shape: f32[8,16], index: 0, kind: input, shape index: {}]
  %s1 = inlined_call_operand.hbm [shape: f32[16,32], index: 1, kind: input, shape index: {}]
  %s2 = inlined_call_operand.vmem [shape: f32[1,32], index: 2, kind: input, shape index: {}]
  %s3 = inlined_call_operand.hbm [shape: f32[32,128], index: 3, kind: input, shape index: {}]
  %s4 = inlined_call_operand.vmem [shape: f32[1,128], index: 4, kind: input, shape index: {}]
  %s5 = inlined_call_operand.vmem [shape: f32[8,1], index: 5, kind: output, shape index: {}]
  %s6 = sld [smem:[#allocation0]]
  $region50: #{tpu_custom_call.1} parent=0
    _
  %s8 = ssub.s32 1, %s6
  %s9 = scalar_select 0, %s8, %s6
  $region1: #{tpu_custom_call.1} parent=0
    #allocation3 [shape = 'u8[4096]{0}', space=vmem, size = 0x1000, scoped, tag = 'input window, operand 0, single buffered']
    #allocation4 [shape = 's32[1]{0}', space=sflag, size = 0x4, scoped, tag = 'scoped memory for tpu_custom_call.1']
    #allocation5 [shape = 'u8[8192]{0}', space=vmem, size = 0x2000, scoped, tag = 'input window, operand 1, single buffered']
    #allocation6 [shape = 's32[1]{0}', space=sflag, size = 0x4, scoped, tag = 'scoped memory for tpu_custom_call.1']
    #allocation7 [shape = 'u8[16384]{0}', space=vmem, size = 0x4000, scoped, tag = 'input window, operand 3, single buffered']
    %10 = vsyncpa [#allocation4], 0
    %11 = vsyncpa [#allocation6], 0
    // Predicated region
    $region2: #{tpu_custom_call.1} parent=1 // pred_check
      _
    $region3: #{tpu_custom_call.1} parent=1 // pred_check_branch
      %13 = sbr.rel (0) target = $region5
    $region4: #{tpu_custom_call.1} parent=1 // pred_region
      %15 = vsyncadd [#allocation4], 0
      %s17 = sshll.u32 %s0, 4
      %s18 = int_to_ptr.hbm [resolvable:$true] %s17
      %s19 = sshll.u32 [#allocation3], 4
      %s20 = int_to_ptr.vmem [resolvable:$true] %s19
      %22 = dma.hbm_to_vmem [thread:$0]  %s18, 128, %s20, [#allocation4]
    $region5: #{tpu_custom_call.1} parent=1 // pred_fallthru
      _
    // Predicated region
    $region6: #{tpu_custom_call.1} parent=1 // pred_check
      _
    $region7: #{tpu_custom_call.1} parent=1 // pred_check_branch
      %24 = sbr.rel (0) target = $region9
    $region8: #{tpu_custom_call.1} parent=1 // pred_region
      %26 = vsyncadd [#allocation6], 0
      %s27 = sshll.u32 %s1, 4
      %s28 = int_to_ptr.hbm [resolvable:$true] %s27
      %s29 = sshll.u32 [#allocation5], 4
      %s30 = int_to_ptr.vmem [resolvable:$true] %s29
      %35 = dma.hbm_to_vmem [thread:$0]  %s28, 256, %s30, [#allocation6], 128, 128, 8
    $region9: #{tpu_custom_call.1} parent=1 // pred_fallthru
      _
    // Predicated region
    $region10: #{tpu_custom_call.1} parent=1 // pred_check
      _
    $region11: #{tpu_custom_call.1} parent=1 // pred_check_branch
      %37 = sbr.rel (0) target = $region13
    $region12: #{tpu_custom_call.1} parent=1 // pred_region
      _
    $region13: #{tpu_custom_call.1} parent=1 // pred_fallthru
      _
    // Predicated region
    $region14: #{tpu_custom_call.1} parent=1 // pred_check
      _
    $region15: #{tpu_custom_call.1} parent=1 // pred_check_branch
      %39 = sbr.rel (0) target = $region17
    $region16: #{tpu_custom_call.1} parent=1 // pred_region
      %41 = vsyncadd [#allocation6], 0
      %s42 = sshll.u32 %s3, 4
      %s43 = int_to_ptr.hbm [resolvable:$true] %s42
      %s44 = sshll.u32 [#allocation7], 4
      %s45 = int_to_ptr.vmem [resolvable:$true] %s44
      %50 = dma.hbm_to_vmem [thread:$0]  %s43, 512, %s45, [#allocation6], 128, 128, 8
    $region17: #{tpu_custom_call.1} parent=1 // pred_fallthru
      _
    // Predicated region
    $region18: #{tpu_custom_call.1} parent=1 // pred_check
      _
    $region19: #{tpu_custom_call.1} parent=1 // pred_check_branch
      %52 = sbr.rel (0) target = $region21
    $region20: #{tpu_custom_call.1} parent=1 // pred_region
      _
    $region21: #{tpu_custom_call.1} parent=1 // pred_fallthru
      _
    // Predicated region
    $region22: #{tpu_custom_call.1} parent=1 // pred_check
      _
    $region23: #{tpu_custom_call.1} parent=1 // pred_check_branch
      %54 = sbr.rel (0) target = $region25
    $region24: #{tpu_custom_call.1} parent=1 // pred_region
      %56 = dma.done [#allocation4], 128
    $region25: #{tpu_custom_call.1} parent=1 // pred_fallthru
      _
    // Predicated region
    $region26: #{tpu_custom_call.1} parent=1 // pred_check
      _
    $region27: #{tpu_custom_call.1} parent=1 // pred_check_branch
      %58 = sbr.rel (0) target = $region29
    $region28: #{tpu_custom_call.1} parent=1 // pred_region
      %60 = dma.done [#allocation6], 256
    $region29: #{tpu_custom_call.1} parent=1 // pred_fallthru
      _
    // Predicated region
    $region30: #{tpu_custom_call.1} parent=1 // pred_check
      _
    $region31: #{tpu_custom_call.1} parent=1 // pred_check_branch
      %62 = sbr.rel (0) target = $region33
    $region32: #{tpu_custom_call.1} parent=1 // pred_region
      %64 = dma.done [#allocation6], 512
    $region33: #{tpu_custom_call.1} parent=1 // pred_fallthru
      _
    %p65 = scmp.eq.s32.totalorder 0, 0
    // Predicated region
    $region34: #{tpu_custom_call.1} parent=1 // pred_check
      %p66 = pneg %p65
    $region35: #{tpu_custom_call.1} parent=1 // pred_check_branch
      %68 = sbr.rel (%p66) target = $region37
    $region36: #{tpu_custom_call.1} parent=1 // pred_region
      %69 = vst [vmem:[#allocation2] sm:$0xff] 0.0
    $region37: #{tpu_custom_call.1} parent=1 // pred_fallthru
      _
    %v70 = vld [vmem:[#allocation3] sm:$0xff]
    %v71 = vld [vmem:[#allocation5] sm:$0xff]
    %v72 = vld [vmem:[#allocation5 + $0x8] sm:$0xff]
    %v73 = vld [vmem:[%s2] sm:$0x1]
    %v75 = vperm.slane %v73, 0
    %vm77 = vcmask 130048
    %v79 = vsel %vm77, %v70, 0
    %81 = vmatpush.msra.mxu0 0.0
    %82 = vmatpush.msra.mxu0 0.0
    %83 = vmatpush.msra.mxu0 0.0
    %84 = vmatpush.msra.mxu0 0.0
    %85 = vmatpush.msra.mxu0 0.0
    %86 = vmatpush.msra.mxu0 0.0
    %87 = vmatpush.msra.mxu0 0.0
    %88 = vmatpush.msra.mxu0 0.0
    %89 = vmatpush.msra.mxu0 0.0
    %90 = vmatpush.msra.mxu0 0.0
    %91 = vmatpush.msra.mxu0 0.0
    %92 = vmatpush.msra.mxu0 0.0
    %93 = vmatpush.msra.mxu0 0.0
    %94 = vmatpush.msra.mxu0 0.0
    %95 = vmatpush.msra.mxu0 %v72
    %96 = vmatpush.msra.mxu0 %v71
    %97 = vmatmul.f32.gmra.mxu0 %v79
    %v98 = vpop.f32.mrf.mxu0
    %v99 = vadd.f32 %v75, %v98
    %100 = vdwg.mxu0
    %v101 = vmax.f32 %v99, 0.0
    %v102 = vld [vmem:[#allocation2] sm:$0xff]
    %v103 = vld [vmem:[#allocation7] sm:$0xff]
    %v104 = vld [vmem:[#allocation7 + $0x8] sm:$0xff]
    %v105 = vld [vmem:[#allocation7 + $0x10] sm:$0xff]
    %v106 = vld [vmem:[#allocation7 + $0x18] sm:$0xff]
    %vm107 = vcmask 261120
    %v109 = vsel %vm107, %v101, 0
    %111 = vmatpush.msra.mxu0 0.0
    %112 = vmatpush.msra.mxu0 0.0
    %113 = vmatpush.msra.mxu0 0.0
    %114 = vmatpush.msra.mxu0 0.0
    %115 = vmatpush.msra.mxu0 0.0
    %116 = vmatpush.msra.mxu0 0.0
    %117 = vmatpush.msra.mxu0 0.0
    %118 = vmatpush.msra.mxu0 0.0
    %119 = vmatpush.msra.mxu0 0.0
    %120 = vmatpush.msra.mxu0 0.0
    %121 = vmatpush.msra.mxu0 0.0
    %122 = vmatpush.msra.mxu0 0.0
    %123 = vmatpush.msra.mxu0 %v106
    %124 = vmatpush.msra.mxu0 %v105
    %125 = vmatpush.msra.mxu0 %v104
    %126 = vmatpush.msra.mxu0 %v103
    %127 = vmatmul.f32.gmra.mxu0 %v109
    %v128 = vpop.f32.mrf.mxu0
    %v129 = vadd.f32 0.0, %v128
    %130 = vdwg.mxu0
    %v131 = vadd.f32 %v102, %v129
    %132 = vst [vmem:[#allocation2] sm:$0xff] %v131
    // Predicated region
    $region38: #{tpu_custom_call.1} parent=1 // pred_check
      %p133 = pneg %p65
    $region39: #{tpu_custom_call.1} parent=1 // pred_check_branch
      %135 = sbr.rel (%p133) target = $region41
    $region40: #{tpu_custom_call.1} parent=1 // pred_region
      %v136 = vld [vmem:[#allocation2] sm:$0xff]
      %v137 = vld [vmem:[%s4] sm:$0x1]
      %v139 = vperm.slane %v137, 0
      %v141 = vadd.f32 %v136, %v139
      %vm142 = vcmask 7168
      %143 = vst.msk [vmem:[%s5] sm:$0xff] %vm142, %v141
    $region41: #{tpu_custom_call.1} parent=1 // pred_fallthru
      _
    // Predicated region
    $region42: #{tpu_custom_call.1} parent=1 // pred_check
      _
    $region43: #{tpu_custom_call.1} parent=1 // pred_check_branch
      %145 = sbr.rel (0) target = $region45
    $region44: #{tpu_custom_call.1} parent=1 // pred_region
      _
    $region45: #{tpu_custom_call.1} parent=1 // pred_fallthru
      _
    // Predicated region
    $region46: #{tpu_custom_call.1} parent=1 // pred_check
      _
    $region47: #{tpu_custom_call.1} parent=1 // pred_check_branch
      %147 = sbr.rel (0) target = $region49
    $region48: #{tpu_custom_call.1} parent=1 // pred_region
      _
    $region49: #{tpu_custom_call.1} parent=1 // pred_fallthru
      _
    %148 = vsyncpa [#allocation4], 1
    %149 = vsyncpa [#allocation6], 1

</llo_original>
